<compile_context>
chip_gen: v7x
topology: tpu7x:2x2x1
jax: 0.10.0
libtpu: 0.0.40
codegen_flags: <defaults>
</compile_context>

<pallas_src>
import jax
import jax.numpy as jnp
from jax.experimental import pallas as pl
from jax.experimental.pallas import tpu as pltpu


# ------------------------- Pallas kernel -------------------------

def _bn_prelu_kernel(x_ref, p_ref, o_ref):
    # x_ref: (tile_r, tile_l) activations (input dtype), one (n, c) row per sublane row.
    # p_ref: (tile_r, 3) per-row [scale, bias, alpha] in f32 (BN folded + PReLU slope).
    x = x_ref[...].astype(jnp.float32)     # in-register upcast; free (VALU slack)
    scale = p_ref[:, 0:1]                  # (tile_r, 1) -> lane-broadcast
    bias = p_ref[:, 1:2]
    alpha = p_ref[:, 2:3]
    y = x * scale + bias                   # eval-mode BatchNorm (eps folded into scale/bias)
    o_ref[...] = jnp.where(y >= 0.0, y, alpha * y).astype(o_ref.dtype)   # PReLU


# ------------------------- wrapper -------------------------

def _round_up(x, m):
    return (x + m - 1) // m * m


def _choose_tiles(rows, hw, itemsize):
    """Pick (tile_r, tile_l): lane dim multiple of 128, row dim aligned to the dtype's
    sublane packing, block size targeting ~2 MiB (safe for v5e/v6e/v7x VMEM budgets)."""
    tile_l = min(2048, _round_up(hw, 128))
    sub = 8 * max(1, 4 // itemsize)                 # f32: 8, bf16/fp16: 16, int8/fp8: 32
    target_bytes = 2 << 20
    tile_r = max(sub, (target_bytes // (tile_l * itemsize)) // sub * sub)
    tile_r = min(tile_r, 1024, _round_up(rows, sub))
    return tile_r, tile_l


def bn_prelu_forward(x_nchw, params, eps=1e-3):
    """Forward pass of BNPReLU: BatchNorm2d(eps=1e-3, eval mode) + PReLU(nIn).

    x_nchw: (N, C, H, W), any float dtype (dtype is preserved in the output).
    params: dict with per-channel vectors 'gamma', 'beta', 'running_mean',
            'running_var', 'alpha', each of shape (C,).
    """
    n, c, h, w = x_nchw.shape
    rows, hw = n * c, h * w
    dtype = x_nchw.dtype
    itemsize = jnp.dtype(dtype).itemsize

    # Fold eval-mode BN into per-channel scale/bias (f32 for accuracy).
    gamma = params["gamma"].astype(jnp.float32)
    beta = params["beta"].astype(jnp.float32)
    mean = params["running_mean"].astype(jnp.float32)
    var = params["running_var"].astype(jnp.float32)
    alpha = params["alpha"].astype(jnp.float32)
    scale = gamma / jnp.sqrt(var + eps)
    bias = beta - mean * scale

    # Tiny per-row parameter table (row = one (n, c) pair), packed as (rows, 3).
    p = jnp.stack([jnp.tile(scale, n), jnp.tile(bias, n), jnp.tile(alpha, n)], axis=1)

    tile_r, tile_l = _choose_tiles(rows, hw, itemsize)
    gr = pl.cdiv(rows, tile_r)
    gl = pl.cdiv(hw, tile_l)

    # Free contiguous view; no pad, no dtype change.
    xf = x_nchw.reshape(rows, hw)

    if gr >= gl:
        grid = (gr, gl)
        x_map = lambda i, j: (i, j)
        p_map = lambda i, j: (i, 0)   # param block constant along the fast (lane) axis
    else:
        # Lane-strip axis outermost: better dual-TC sharding for row-poor shapes (v7x).
        grid = (gl, gr)
        x_map = lambda j, i: (i, j)
        p_map = lambda j, i: (i, 0)

    out = pl.pallas_call(
        _bn_prelu_kernel,
        out_shape=jax.ShapeDtypeStruct((rows, hw), dtype),
        grid=grid,
        in_specs=[
            pl.BlockSpec((tile_r, tile_l), x_map),
            pl.BlockSpec((tile_r, 3), p_map),
        ],
        out_specs=pl.BlockSpec((tile_r, tile_l), x_map),
        compiler_params=pltpu.CompilerParams(
            dimension_semantics=("parallel", "parallel")),
    )(xf, p)

    return out.reshape(n, c, h, w)


# ------------------------- reference & init -------------------------

def bn_prelu_reference(x_nchw, params, eps=1e-3):
    scale = params["gamma"] / jnp.sqrt(params["running_var"] + eps)
    bias = params["beta"] - params["running_mean"] * scale
    y = x_nchw * scale[None, :, None, None] + bias[None, :, None, None]
    a = params["alpha"][None, :, None, None]
    return jnp.where(y >= 0.0, y, a * y)


def init_params(key, c):
    kg, kb, km, kv, ka = jax.random.split(key, 5)
    gamma = 1.0 + 0.1 * jax.random.normal(kg, (c,), jnp.float32)
    beta = 0.1 * jax.random.normal(kb, (c,), jnp.float32)
    running_mean = 0.1 * jax.random.normal(km, (c,), jnp.float32)
    running_var = 0.5 + jnp.abs(jax.random.normal(kv, (c,), jnp.float32))
    alpha = 0.25 + 0.05 * jax.random.normal(ka, (c,), jnp.float32)  # PReLU slopes
    return dict(gamma=gamma, beta=beta, running_mean=running_mean,
                running_var=running_var, alpha=alpha)


if __name__ == "__main__":
    key = jax.random.PRNGKey(0)
    kp, kx = jax.random.split(key, 2)

    N, C, H, W = 2, 4, 16, 16
    params = init_params(kp, C)
    x = jax.random.normal(kx, (N, C, H, W), jnp.float32)

    # f32 path
    out = jax.block_until_ready(jax.jit(bn_prelu_forward)(x, params))
    ref = bn_prelu_reference(x, params)
    assert out.shape == (N, C, H, W), out.shape
    assert out.dtype == x.dtype
    assert bool(jnp.all(jnp.isfinite(out)))
    assert bool(jnp.allclose(out, ref, rtol=1e-5, atol=1e-5))

    # bf16 path: dtype preserved end-to-end (halves HBM traffic for half-precision inputs)
    xb = x.astype(jnp.bfloat16)
    outb = jax.block_until_ready(jax.jit(bn_prelu_forward)(xb, params))
    refb = bn_prelu_reference(xb.astype(jnp.float32), params)
    assert outb.dtype == jnp.bfloat16
    assert bool(jnp.allclose(outb.astype(jnp.float32), refb, rtol=3e-2, atol=3e-2))

    print("KERNEL_OK")
</pallas_src>

<mosaic_0001>
module attributes {stable_mosaic.version = 11 : i64} {
  func.func @_bn_prelu_kernel(%arg0: i32, %arg1: i32, %arg2: memref<8x256xf32, #tpu.memory_space<vmem>>, %arg3: memref<8x3xf32, #tpu.memory_space<vmem>>, %arg4: memref<8x256xf32, #tpu.memory_space<vmem>>) attributes {dimension_semantics = [#tpu.dimension_semantics<parallel>, #tpu.dimension_semantics<parallel>], iteration_bounds = array<i64: 1, 1>, scalar_prefetch = 0 : i64, scratch_operands = 0 : i64, tpu.core_type = #tpu.core_type<tc>, window_params = [{transform_indices = @transform_0, window_bounds = array<i64: 8, 256>}, {transform_indices = @transform_1, window_bounds = array<i64: 8, 3>}, {transform_indices = @transform_2, window_bounds = array<i64: 8, 256>}]} {
    %c0 = arith.constant 0 : index
    %c0_0 = arith.constant 0 : index
    %0 = vector.load %arg2[%c0, %c0_0] : memref<8x256xf32, #tpu.memory_space<vmem>>, vector<8x256xf32>
    %c0_1 = arith.constant 0 : index
    %c0_2 = arith.constant 0 : index
    %1 = vector.load %arg3[%c0_1, %c0_2] : memref<8x3xf32, #tpu.memory_space<vmem>>, vector<8x1xf32>
    %c0_3 = arith.constant 0 : index
    %c1 = arith.constant 1 : index
    %2 = vector.load %arg3[%c0_3, %c1] : memref<8x3xf32, #tpu.memory_space<vmem>>, vector<8x1xf32>
    %c0_4 = arith.constant 0 : index
    %c2 = arith.constant 2 : index
    %3 = vector.load %arg3[%c0_4, %c2] : memref<8x3xf32, #tpu.memory_space<vmem>>, vector<8x1xf32>
    %4 = vector.broadcast %1 : vector<8x1xf32> to vector<8x256xf32>
    %5 = arith.mulf %0, %4 : vector<8x256xf32>
    %6 = vector.broadcast %2 : vector<8x1xf32> to vector<8x256xf32>
    %7 = arith.addf %5, %6 : vector<8x256xf32>
    %cst = arith.constant 0.000000e+00 : f32
    %8 = vector.broadcast %cst : f32 to vector<8x256xf32>
    %9 = arith.cmpf oge, %7, %8 : vector<8x256xf32>
    %10 = vector.broadcast %3 : vector<8x1xf32> to vector<8x256xf32>
    %11 = arith.mulf %10, %7 : vector<8x256xf32>
    %12 = arith.select %9, %7, %11 : vector<8x256xi1>, vector<8x256xf32>
    %c0_5 = arith.constant 0 : index
    %c0_6 = arith.constant 0 : index
    %13 = vector.load %arg4[%c0_5, %c0_6] : memref<8x256xf32, #tpu.memory_space<vmem>>, vector<8x256xf32>
    tpu.vector_store %arg4[%c0_5, %c0_6], %12 {strides = array<i32>} : memref<8x256xf32, #tpu.memory_space<vmem>>, vector<8x256xf32>,
    return
  }
  func.func @transform_0(%arg0: i32, %arg1: i32) -> (i32, i32) {
    %c0_i32 = arith.constant 0 : i32
    return %arg0, %arg1 : i32, i32
  }
  func.func @transform_1(%arg0: i32, %arg1: i32) -> (i32, i32) {
    %c0_i32 = arith.constant 0 : i32
    %c0_i32_0 = arith.constant 0 : i32
    return %arg0, %c0_i32 : i32, i32
  }
  func.func @transform_2(%arg0: i32, %arg1: i32) -> (i32, i32) {
    %c0_i32 = arith.constant 0 : i32
    return %arg0, %arg1 : i32, i32
  }
}

</mosaic_0001>

<llo_original>
// kernel: tile.0
$region0: #{tile.0}
  %s0 = inlined_call_operand.vmem [shape: f32[2,4], index: 0, kind: input, shape index: {}]
  %s1 = inlined_call_operand.vmem [shape: f32[8,1], index: 1, kind: output, shape index: {}]
  $region1: #{tile.0} parent=0
    #allocation0 [shape = 'u8[4096]{0}', space=vmem, size = 0x1000, scoped, tag = 'scoped mem for input reshape']
    %s3 = sshllo.u32 0, 2
    %v4 = vld [vmem:[%s0] sm:%s3]
    %5 = vst [vmem:[#allocation0] sm:%s3] %v4
    %v6 = vld [vmem:[#allocation0] sm:$0x3]
    %vm7 = vcmask 7168
    %8 = vst.msk [vmem:[%s1] ss:$4 sm:$0x3] %vm7, %v6
    %v9 = vld [vmem:[#allocation0] sm:$0x3]
    %10 = vrot.lane.b32.xlu0 %v9, 127
    %v11 = vpop.permute.xlu0 %10
    %vm12 = vcmask 7168
    %s13 = scalar_lea.vmem %s1, 1
    %14 = vst.msk [vmem:[%s13] ss:$4 sm:$0x3] %vm12, %v11
    %v15 = vld [vmem:[#allocation0] sm:$0x3]
    %16 = vrot.lane.b32.xlu0 %v15, 126
    %v17 = vpop.permute.xlu0 %16
    %vm18 = vcmask 7168
    %s19 = scalar_lea.vmem %s1, 2
    %20 = vst.msk [vmem:[%s19] ss:$4 sm:$0x3] %vm18, %v17
    %v21 = vld [vmem:[#allocation0] sm:$0x3]
    %22 = vrot.lane.b32.xlu0 %v21, 125
    %v23 = vpop.permute.xlu0 %22
    %vm24 = vcmask 7168
    %s25 = scalar_lea.vmem %s1, 3
    %26 = vst.msk [vmem:[%s25] ss:$4 sm:$0x3] %vm24, %v23

// kernel: tile.26
$region0: #{tile.26}
  #allocation0 [shape = 's32[1]{0}', space=sflag, size = 0x4, scoped, tag = 'scoped memory for tile.26']
  %s0 = inlined_call_operand.vmem [shape: f32[4], index: 0, kind: input, shape index: {}]
  %s1 = inlined_call_operand.vmem [shape: f32[2,4], index: 1, kind: output, shape index: {}]
  // Predicated region
  $region2: #{tile.26} parent=0 // pred_check
    _
  $region3: #{tile.26} parent=0 // pred_check_branch
    %3 = sbr.rel (0) target = $region5
  $region4: #{tile.26} parent=0 // pred_region
    _
  $region5: #{tile.26} parent=0 // pred_fallthru
    _
  %v4 = vld [vmem:[%s0] ss:$0 sm:$0xff]
  %5 = vst [vmem:[%s1] sm:$0x3] %v4

// kernel: bn_prelu_forward.1
$region0: #{bn_prelu_forward.1}
  #allocation0 [shape = 'u32[]', space=smem, size = 0x4, offset = 0x4, fixed_abs, tag = 'smem constant byte address 0x4 - core index']
  #allocation1 [shape = 'u32[144,128]{1,0:T(1,128)}', space=vmem, size = 0x12000, scoped, tag = 'internal scratch']
  %s0 = inlined_call_operand.vmem [shape: f32[8,256], index: 0, kind: input, shape index: {}]
  %s1 = inlined_call_operand.vmem [shape: f32[8,3], index: 1, kind: input, shape index: {}]
  %s2 = inlined_call_operand.vmem [shape: f32[8,256], index: 2, kind: output, shape index: {}]
  %s3 = sld [smem:[#allocation0]]
  $region18: #{bn_prelu_forward.1} parent=0
    _
  %s5 = ssub.s32 1, %s3
  %s6 = scalar_select 0, %s5, %s3
  // Predicated region
  $region2: #{bn_prelu_forward.1} parent=0 // pred_check
    _
  $region3: #{bn_prelu_forward.1} parent=0 // pred_check_branch
    %8 = sbr.rel (0) target = $region5
  $region4: #{bn_prelu_forward.1} parent=0 // pred_region
    _
  $region5: #{bn_prelu_forward.1} parent=0 // pred_fallthru
    _
  // Predicated region
  $region6: #{bn_prelu_forward.1} parent=0 // pred_check
    _
  $region7: #{bn_prelu_forward.1} parent=0 // pred_check_branch
    %10 = sbr.rel (0) target = $region9
  $region8: #{bn_prelu_forward.1} parent=0 // pred_region
    _
  $region9: #{bn_prelu_forward.1} parent=0 // pred_fallthru
    _
  %v11 = vld [vmem:[%s0] sm:$0xff]
  %v12 = vld [vmem:[%s0 + $0x8] sm:$0xff]
  %v13 = vld [vmem:[%s1] sm:$0xff]
  %15 = vset.pattern.permute.xlu0 0
  %16 = vperm.xlu0 %15, %v13
  %v17 = vpop.permute.xlu0 %16
  %v19 = vmul.f32 %v11, %v17
  %v20 = vmul.f32 %v12, %v17
  %21 = vset.pattern.permute.xlu0 1
  %22 = vperm.xlu0 %21, %v13
  %v23 = vpop.permute.xlu0 %22
  %v25 = vadd.f32 %v19, %v23
  %v26 = vadd.f32 %v20, %v23
  %vm27 = vcmp.ge.f32.partialorder %v25, 0.0
  %vm28 = vcmp.ge.f32.partialorder %v26, 0.0
  %29 = vset.pattern.permute.xlu0 2
  %30 = vperm.xlu0 %29, %v13
  %v31 = vpop.permute.xlu0 %30
  %v33 = vmul.f32 %v31, %v25
  %v34 = vmul.f32 %v31, %v26
  %v35 = vsel %vm27, %v25, %v33
  %v36 = vsel %vm28, %v26, %v34
  %37 = vst [vmem:[%s2] sm:$0xff] %v35
  %38 = vst [vmem:[%s2 + $0x8] sm:$0xff] %v36
  // Predicated region
  $region10: #{bn_prelu_forward.1} parent=0 // pred_check
    _
  $region11: #{bn_prelu_forward.1} parent=0 // pred_check_branch
    %40 = sbr.rel (0) target = $region13
  $region12: #{bn_prelu_forward.1} parent=0 // pred_region
    _
  $region13: #{bn_prelu_forward.1} parent=0 // pred_fallthru
    _
  // Predicated region
  $region14: #{bn_prelu_forward.1} parent=0 // pred_check
    _
  $region15: #{bn_prelu_forward.1} parent=0 // pred_check_branch
    %42 = sbr.rel (0) target = $region17
  $region16: #{bn_prelu_forward.1} parent=0 // pred_region
    _
  $region17: #{bn_prelu_forward.1} parent=0 // pred_fallthru
    _

</llo_original>
